<compile_context>
chip_gen: v7x
topology: tpu7x:2x2x1
jax: 0.10.0
libtpu: 0.0.40
codegen_flags: <defaults>
</compile_context>

<pallas_src>
import functools

import numpy as np
import jax
import jax.numpy as jnp
from jax.experimental import pallas as pl
from jax.experimental.pallas import tpu as pltpu


# ----------------------------------------------------------------------------
# Parameter construction (mirrors init_kernels(..., invers=True) in the module)
# ----------------------------------------------------------------------------
def _round_up(x, m):
    return ((x + m - 1) // m) * m


def _hamming_periodic(win_len):
    # scipy.signal.get_window('hamming', win_len, fftbins=True)
    n = np.arange(win_len)
    return 0.54 - 0.46 * np.cos(2.0 * np.pi * n / win_len)


def init_istft_kernels(win_len, fft_len, win_type="hamming"):
    """Returns (kernel (fft_len+2, win_len), window (win_len,)) as float32."""
    if win_type is None or win_type == "None":
        window = np.ones(win_len)
    elif win_type == "hamming":
        window = _hamming_periodic(win_len)
    else:
        raise ValueError(f"unsupported win_type: {win_type}")
    N = fft_len
    fourier_basis = np.fft.rfft(np.eye(N))[:win_len]                 # (win_len, N//2+1)
    kernel = np.concatenate([np.real(fourier_basis),
                             np.imag(fourier_basis)], 1).T           # (N+2, win_len)
    kernel = np.linalg.pinv(kernel).T                                # synthesis (inverse) basis
    kernel = kernel * window                                         # window per tap
    return kernel.astype(np.float32), window.astype(np.float32)


# ----------------------------------------------------------------------------
# Pallas kernel: one fused MXU matmul + lane-aligned overlap-add
# ----------------------------------------------------------------------------
def _conv_istft_kernel(spec_ref, w_ref, out_ref, carry_ref, *,
                       n_overlap, carry_pad, n_pad, tile_t):
    # spec_ref : (1, tile_t, C)              time-major spectrogram block (compute dtype)
    # w_ref    : (C, R*n_pad)                synthesis weights, each hop slice padded to
    #                                        128 lanes, 1/(coff+eps) folded in
    # out_ref  : (1, tile_t, n_pad)          hop-sized output chunks (lane-dense stores)
    # carry_ref: (1, 1, carry_pad, n_pad)    contribution of this tile's last frames to
    #                                        the NEXT tile's first chunks (wrapper adds it)
    #
    # conv_transpose1d == per-frame synthesis.  Single fused MXU matmul, f32 accumulate:
    # p[t, r*n_pad + m] = contribution of frame t to output chunk (t + r), sample offset m.
    p = jnp.dot(spec_ref[0], w_ref[...], preferred_element_type=jnp.float32)

    acc = p[:, :n_pad]                                           # r = 0, no shift
    carry = jnp.zeros((carry_pad, n_pad), jnp.float32)
    row = jax.lax.broadcasted_iota(jnp.int32, (tile_t, n_pad), 0)    # hoisted once
    hrow = jax.lax.broadcasted_iota(jnp.int32, (carry_pad, n_pad), 0)

    for r in range(1, n_overlap + 1):
        # 128-lane-aligned slice of the matmul result, then a sublane rotation (XLU slot):
        # rolled[j] = p[j - r]  (frame j-r feeding chunk j); the wrapped head rows j < r
        # are exactly the contributions to the next tile's chunks j -> carry.
        rolled = pltpu.roll(p[:, r * n_pad:(r + 1) * n_pad], shift=r, axis=0)
        acc = acc + jnp.where(row >= r, rolled, 0.0)
        carry = carry + jnp.where(hrow < r, rolled[:carry_pad, :], 0.0)

    out_ref[0] = acc
    carry_ref[0, 0] = carry


def conv_istft(inputs, win_len, win_inc, fft_len=None, win_type="hamming",
               phase=None, time_tile=None, compute_dtype=jnp.bfloat16,
               interpret=False):
    """ConviSTFT.forward.

    inputs: (B, fft_len+2, T) complex spec, or (B, fft_len//2+1, T) magnitudes together
    with `phase` of the same shape.  Returns (B, 1, (T - win_len//win_inc + 1) * win_inc).
    """
    if fft_len is None:
        fft_len = int(2 ** np.ceil(np.log2(win_len)))
    if win_len % win_inc != 0 or win_len <= win_inc:
        raise ValueError("requires win_len to be a multiple of win_inc and > win_inc")
    R = win_len // win_inc                 # frames overlapping each output sample
    n_overlap = R - 1
    C = fft_len + 2

    kernel_np, window_np = init_istft_kernels(win_len, fft_len, win_type)   # (C, win_len)

    # For every retained sample, coff = sum_r window[r*win_inc + m]^2 depends only on
    # m = n % win_inc, so the division by (coff + 1e-8) is folded into the weights.
    coff = (window_np.astype(np.float64) ** 2).reshape(R, win_inc).sum(axis=0)
    w_fused = kernel_np.astype(np.float64) * np.tile(1.0 / (coff + 1e-8), R)[None, :]

    # Pad every hop-sized weight slice to 128 lanes and stack them: all in-kernel slices
    # of the matmul result become 128-lane aligned and the output store is lane-dense.
    n_pad = _round_up(win_inc, 128)
    w_stack = np.zeros((C, R * n_pad), np.float64)
    for r in range(R):
        w_stack[:, r * n_pad:r * n_pad + win_inc] = \
            w_fused[:, r * win_inc:(r + 1) * win_inc]
    w_stack = jnp.asarray(w_stack.astype(np.float32)).astype(compute_dtype)

    if phase is not None:
        # polar -> cartesian of the PyTorch forward (elementwise; XLA fuses this with the
        # transpose + dtype cast below, so the full C x T spec is written to HBM once).
        inputs = jnp.concatenate([inputs * jnp.cos(phase),
                                  inputs * jnp.sin(phase)], axis=1)
    B, Cs, T = inputs.shape
    if Cs != C:
        raise ValueError(f"expected {C} channels, got {Cs}")
    if T <= n_overlap:
        raise ValueError("need more frames than the window overlap")

    # Pre-transposed, reduced-precision spectrogram: the kernel runs a clean (M,K)x(K,N)
    # matmul with no per-tile LHS relayout, and the spec DMA is half-width in bf16.
    spec_t = jnp.transpose(inputs, (0, 2, 1)).astype(compute_dtype)          # (B, T, C)

    # Time tiling: lane-/sublane-aligned and small enough for every generation's scoped
    # VMEM (v7x has 64 MiB physical); raise toward 2048 on v5e/v6e if desired.
    if time_tile is None:
        time_tile = min(1024, _round_up(T, 128))
    if time_tile % 128 != 0:
        raise ValueError("time_tile must be a multiple of 128")
    if n_overlap >= time_tile:
        raise ValueError("time_tile must exceed the frame overlap")
    T_pad = _round_up(T, time_tile)
    if T_pad != T:
        spec_t = jnp.pad(spec_t, ((0, 0), (0, T_pad - T), (0, 0)))  # zero frames, trimmed
    n_tiles = T_pad // time_tile
    carry_pad = _round_up(max(n_overlap, 1), 8)                     # sublane-aligned

    kernel_fn = functools.partial(
        _conv_istft_kernel, n_overlap=n_overlap, carry_pad=carry_pad,
        n_pad=n_pad, tile_t=time_tile)

    out, carry = pl.pallas_call(
        kernel_fn,
        out_shape=(jax.ShapeDtypeStruct((B, T_pad, n_pad), jnp.float32),
                   jax.ShapeDtypeStruct((B, n_tiles, carry_pad, n_pad), jnp.float32)),
        grid_spec=pltpu.PrefetchScalarGridSpec(
            num_scalar_prefetch=0,
            grid=(B, n_tiles),
            in_specs=[
                pl.BlockSpec((1, time_tile, C), lambda b, i: (b, i, 0)),
                pl.BlockSpec((C, R * n_pad), lambda b, i: (0, 0)),   # invariant -> once
            ],
            out_specs=[
                pl.BlockSpec((1, time_tile, n_pad), lambda b, i: (b, i, 0)),
                pl.BlockSpec((1, 1, carry_pad, n_pad), lambda b, i: (b, i, 0, 0)),
            ],
        ),
        # No cross-iteration state -> both axes parallel (v7x megacore works even at B=1).
        compiler_params=pltpu.CompilerParams(
            dimension_semantics=("parallel", "parallel")),
        interpret=interpret,
    )(spec_t, w_stack)

    # Tiny cross-tile overlap-add fix-up (tile i's carry feeds tile i+1's first chunks).
    if n_tiles > 1:
        out = out.reshape(B, n_tiles, time_tile, n_pad)
        out = out.at[:, 1:, :carry_pad, :].add(carry[:, :-1])
        out = out.reshape(B, T_pad, n_pad)

    # PyTorch trims (win_len - win_inc) samples on each side == the first and the last
    # (R-1) hop chunks; the trailing ones are never produced, so drop the leading ones,
    # drop the lane padding, and flatten to a contiguous waveform (B, 1, samples).
    n_keep = T - n_overlap
    wav = out[:, n_overlap:T, :win_inc].reshape(B, 1, n_keep * win_inc)
    return wav


# ----------------------------------------------------------------------------
# Demo / self-check
# ----------------------------------------------------------------------------
if __name__ == "__main__":
    WIN_LEN, WIN_INC, FFT_LEN = 32, 8, 32     # R = 4 overlapping frames
    B, T = 2, 200                             # 2 time tiles of 128 (+ padding) -> carry path
    C = FFT_LEN + 2
    DIM = FFT_LEN // 2 + 1

    key = jax.random.PRNGKey(0)
    k1, k2, k3 = jax.random.split(key, 3)

    spec = jax.random.normal(k1, (B, C, T), dtype=jnp.float32)
    mags = jnp.abs(jax.random.normal(k2, (B, DIM, T), dtype=jnp.float32))
    ph = jax.random.uniform(k3, (B, DIM, T), minval=-np.pi, maxval=np.pi,
                            dtype=jnp.float32)

    # Pure numpy reference mirroring F.conv_transpose1d + coff division + trim.
    def reference(spec_np):
        kernel_np, window_np = init_istft_kernels(WIN_LEN, FFT_LEN, "hamming")
        Bn, Cn, Tn = spec_np.shape
        L = (Tn - 1) * WIN_INC + WIN_LEN
        frames = np.einsum("bct,ck->btk", spec_np.astype(np.float64),
                           kernel_np.astype(np.float64))
        outp = np.zeros((Bn, L), np.float64)
        coff = np.zeros((L,), np.float64)
        w2 = window_np.astype(np.float64) ** 2
        for t in range(Tn):
            outp[:, t * WIN_INC:t * WIN_INC + WIN_LEN] += frames[:, t]
            coff[t * WIN_INC:t * WIN_INC + WIN_LEN] += w2
        outp = outp / (coff + 1e-8)
        trim = WIN_LEN - WIN_INC
        return outp[:, trim:L - trim]

    def check(got, ref, tol):
        got = np.asarray(got[:, 0, :], np.float64)
        assert got.shape == ref.shape, (got.shape, ref.shape)
        err = float(np.max(np.abs(got - ref)))
        scale = float(np.max(np.abs(ref))) + 1e-6
        assert err <= tol * scale, (err, scale, tol)

    ref = reference(np.asarray(spec))

    # Path 1a: full complex spectrogram, f32 compute (correctness baseline).
    wav_f32 = jax.block_until_ready(
        conv_istft(spec, WIN_LEN, WIN_INC, FFT_LEN, win_type="hamming",
                   time_tile=128, compute_dtype=jnp.float32))
    check(wav_f32, ref, 1e-2)

    # Path 1b: same input, bf16 fast path (default).
    wav_bf16 = jax.block_until_ready(
        conv_istft(spec, WIN_LEN, WIN_INC, FFT_LEN, win_type="hamming",
                   time_tile=128, compute_dtype=jnp.bfloat16))
    check(wav_bf16, ref, 5e-2)

    # Path 2: magnitude + phase input.
    spec_p = np.concatenate([np.asarray(mags) * np.cos(np.asarray(ph)),
                             np.asarray(mags) * np.sin(np.asarray(ph))], axis=1)
    ref_p = reference(spec_p)
    wav_p = jax.block_until_ready(
        conv_istft(mags, WIN_LEN, WIN_INC, FFT_LEN, win_type="hamming",
                   phase=ph, time_tile=128))
    check(wav_p, ref_p, 5e-2)

    print("KERNEL_OK")
</pallas_src>

<mosaic_0001>
module attributes {stable_mosaic.version = 11 : i64} {
  func.func @_conv_istft_kernel(%arg0: i32, %arg1: i32, %arg2: memref<1x128x34xf32, #tpu.memory_space<vmem>>, %arg3: memref<34x512xf32, #tpu.memory_space<vmem>>, %arg4: memref<1x128x128xf32, #tpu.memory_space<vmem>>, %arg5: memref<1x1x8x128xf32, #tpu.memory_space<vmem>>) attributes {dimension_semantics = [#tpu.dimension_semantics<parallel>, #tpu.dimension_semantics<parallel>], iteration_bounds = array<i64: 2, 2>, scalar_prefetch = 0 : i64, scratch_operands = 0 : i64, tpu.core_type = #tpu.core_type<tc>, window_params = [{transform_indices = @transform_0, window_bounds = array<i64: 1, 128, 34>}, {pipeline_mode = #tpu.pipeline_mode<synchronous>, transform_indices = @transform_1, window_bounds = array<i64: 34, 512>}, {transform_indices = @transform_2, window_bounds = array<i64: 1, 128, 128>}, {transform_indices = @transform_3, window_bounds = array<i64: 1, 1, 8, 128>}]} {
    %c0 = arith.constant 0 : index
    %c0_0 = arith.constant 0 : index
    %c0_1 = arith.constant 0 : index
    %0 = vector.load %arg2[%c0, %c0_0, %c0_1] : memref<1x128x34xf32, #tpu.memory_space<vmem>>, vector<1x128x34xf32>
    %1 = vector.shape_cast %0 : vector<1x128x34xf32> to vector<128x34xf32>
    %c0_2 = arith.constant 0 : index
    %c0_3 = arith.constant 0 : index
    %2 = vector.load %arg3[%c0_2, %c0_3] : memref<34x512xf32, #tpu.memory_space<vmem>>, vector<34x512xf32>
    %cst = arith.constant dense<0.000000e+00> : vector<128x512xf32>
    %3 = tpu.matmul %1, %2, %cst {dimension_numbers = #tpu.dot_dimension_numbers<[1], [0], [0], [1], [0, 0, 1, 1], [], []>} : vector<128x34xf32>, vector<34x512xf32>, vector<128x512xf32> -> vector<128x512xf32>
    %4 = vector.extract_strided_slice %3 {offsets = [0, 0], sizes = [128, 128], strides = [1, 1]} : vector<128x512xf32> to vector<128x128xf32>
    %cst_4 = arith.constant 0.000000e+00 : f32
    %5 = vector.broadcast %cst_4 : f32 to vector<8x128xf32>
    %6 = tpu.iota {dimensions = array<i32: 0>} : vector<128x128xi32>
    %7 = tpu.iota {dimensions = array<i32: 0>} : vector<8x128xi32>
    %8 = vector.extract_strided_slice %3 {offsets = [0, 128], sizes = [128, 128], strides = [1, 1]} : vector<128x512xf32> to vector<128x128xf32>
    %c1_i32 = arith.constant 1 : i32
    %9 = tpu.dynamic_rotate %8 by %c1_i32 dim 0 : vector<128x128xf32>, i32 -> vector<128x128xf32>
    %c1_i32_5 = arith.constant 1 : i32
    %10 = vector.broadcast %c1_i32_5 : i32 to vector<128x128xi32>
    %11 = arith.cmpi sge, %6, %10 : vector<128x128xi32>
    %cst_6 = arith.constant 0.000000e+00 : f32
    %12 = vector.broadcast %cst_6 : f32 to vector<128x128xf32>
    %13 = arith.select %11, %9, %12 : vector<128x128xi1>, vector<128x128xf32>
    %14 = arith.addf %4, %13 : vector<128x128xf32>
    %c1_i32_7 = arith.constant 1 : i32
    %15 = vector.broadcast %c1_i32_7 : i32 to vector<8x128xi32>
    %16 = arith.cmpi slt, %7, %15 : vector<8x128xi32>
    %17 = vector.extract_strided_slice %9 {offsets = [0, 0], sizes = [8, 128], strides = [1, 1]} : vector<128x128xf32> to vector<8x128xf32>
    %cst_8 = arith.constant 0.000000e+00 : f32
    %18 = vector.broadcast %cst_8 : f32 to vector<8x128xf32>
    %19 = arith.select %16, %17, %18 : vector<8x128xi1>, vector<8x128xf32>
    %20 = arith.addf %5, %19 : vector<8x128xf32>
    %21 = vector.extract_strided_slice %3 {offsets = [0, 256], sizes = [128, 128], strides = [1, 1]} : vector<128x512xf32> to vector<128x128xf32>
    %c2_i32 = arith.constant 2 : i32
    %22 = tpu.dynamic_rotate %21 by %c2_i32 dim 0 : vector<128x128xf32>, i32 -> vector<128x128xf32>
    %c2_i32_9 = arith.constant 2 : i32
    %23 = vector.broadcast %c2_i32_9 : i32 to vector<128x128xi32>
    %24 = arith.cmpi sge, %6, %23 : vector<128x128xi32>
    %cst_10 = arith.constant 0.000000e+00 : f32
    %25 = vector.broadcast %cst_10 : f32 to vector<128x128xf32>
    %26 = arith.select %24, %22, %25 : vector<128x128xi1>, vector<128x128xf32>
    %27 = arith.addf %14, %26 : vector<128x128xf32>
    %c2_i32_11 = arith.constant 2 : i32
    %28 = vector.broadcast %c2_i32_11 : i32 to vector<8x128xi32>
    %29 = arith.cmpi slt, %7, %28 : vector<8x128xi32>
    %30 = vector.extract_strided_slice %22 {offsets = [0, 0], sizes = [8, 128], strides = [1, 1]} : vector<128x128xf32> to vector<8x128xf32>
    %cst_12 = arith.constant 0.000000e+00 : f32
    %31 = vector.broadcast %cst_12 : f32 to vector<8x128xf32>
    %32 = arith.select %29, %30, %31 : vector<8x128xi1>, vector<8x128xf32>
    %33 = arith.addf %20, %32 : vector<8x128xf32>
    %34 = vector.extract_strided_slice %3 {offsets = [0, 384], sizes = [128, 128], strides = [1, 1]} : vector<128x512xf32> to vector<128x128xf32>
    %c3_i32 = arith.constant 3 : i32
    %35 = tpu.dynamic_rotate %34 by %c3_i32 dim 0 : vector<128x128xf32>, i32 -> vector<128x128xf32>
    %c3_i32_13 = arith.constant 3 : i32
    %36 = vector.broadcast %c3_i32_13 : i32 to vector<128x128xi32>
    %37 = arith.cmpi sge, %6, %36 : vector<128x128xi32>
    %cst_14 = arith.constant 0.000000e+00 : f32
    %38 = vector.broadcast %cst_14 : f32 to vector<128x128xf32>
    %39 = arith.select %37, %35, %38 : vector<128x128xi1>, vector<128x128xf32>
    %40 = arith.addf %27, %39 : vector<128x128xf32>
    %c3_i32_15 = arith.constant 3 : i32
    %41 = vector.broadcast %c3_i32_15 : i32 to vector<8x128xi32>
    %42 = arith.cmpi slt, %7, %41 : vector<8x128xi32>
    %43 = vector.extract_strided_slice %35 {offsets = [0, 0], sizes = [8, 128], strides = [1, 1]} : vector<128x128xf32> to vector<8x128xf32>
    %cst_16 = arith.constant 0.000000e+00 : f32
    %44 = vector.broadcast %cst_16 : f32 to vector<8x128xf32>
    %45 = arith.select %42, %43, %44 : vector<8x128xi1>, vector<8x128xf32>
    %46 = arith.addf %33, %45 : vector<8x128xf32>
    %c0_17 = arith.constant 0 : index
    %c0_18 = arith.constant 0 : index
    %c0_19 = arith.constant 0 : index
    %47 = vector.load %arg4[%c0_17, %c0_18, %c0_19] : memref<1x128x128xf32, #tpu.memory_space<vmem>>, vector<1x128x128xf32>
    %48 = vector.shape_cast %47 : vector<1x128x128xf32> to vector<128x128xf32>
    %49 = vector.shape_cast %40 : vector<128x128xf32> to vector<1x128x128xf32>
    tpu.vector_store %arg4[%c0_17, %c0_18, %c0_19], %49 {strides = array<i32>} : memref<1x128x128xf32, #tpu.memory_space<vmem>>, vector<1x128x128xf32>,
    %c0_20 = arith.constant 0 : index
    %c0_21 = arith.constant 0 : index
    %c0_22 = arith.constant 0 : index
    %c0_23 = arith.constant 0 : index
    %50 = vector.load %arg5[%c0_20, %c0_21, %c0_22, %c0_23] : memref<1x1x8x128xf32, #tpu.memory_space<vmem>>, vector<1x1x8x128xf32>
    %51 = vector.shape_cast %50 : vector<1x1x8x128xf32> to vector<8x128xf32>
    %52 = vector.shape_cast %46 : vector<8x128xf32> to vector<1x1x8x128xf32>
    tpu.vector_store %arg5[%c0_20, %c0_21, %c0_22, %c0_23], %52 {strides = array<i32>} : memref<1x1x8x128xf32, #tpu.memory_space<vmem>>, vector<1x1x8x128xf32>,
    return
  }
  func.func @transform_0(%arg0: i32, %arg1: i32) -> (i32, i32, i32) {
    %c0_i32 = arith.constant 0 : i32
    %c0_i32_0 = arith.constant 0 : i32
    return %arg0, %arg1, %c0_i32 : i32, i32, i32
  }
  func.func @transform_1(%arg0: i32, %arg1: i32) -> (i32, i32) {
    %c0_i32 = arith.constant 0 : i32
    %c0_i32_0 = arith.constant 0 : i32
    %c0_i32_1 = arith.constant 0 : i32
    return %c0_i32, %c0_i32_0 : i32, i32
  }
  func.func @transform_2(%arg0: i32, %arg1: i32) -> (i32, i32, i32) {
    %c0_i32 = arith.constant 0 : i32
    %c0_i32_0 = arith.constant 0 : i32
    return %arg0, %arg1, %c0_i32 : i32, i32, i32
  }
  func.func @transform_3(%arg0: i32, %arg1: i32) -> (i32, i32, i32, i32) {
    %c0_i32 = arith.constant 0 : i32
    %c0_i32_0 = arith.constant 0 : i32
    %c0_i32_1 = arith.constant 0 : i32
    return %arg0, %arg1, %c0_i32, %c0_i32_0 : i32, i32, i32, i32
  }
}

</mosaic_0001>

<llo_original>
// kernel: tpu_custom_call.1
$region0: #{tpu_custom_call.1}
  #allocation0 [shape = 'u32[]', space=smem, size = 0x4, offset = 0x4, fixed_abs, tag = 'smem constant byte address 0x4 - core index']
  #allocation1 [shape = 'u32[144,128]{1,0:T(1,128)}', space=vmem, size = 0x12000, scoped, tag = 'internal scratch']
  %s0 = inlined_call_operand.vmem [shape: f32[2,256,34], index: 0, kind: input, shape index: {}]
  %s1 = inlined_call_operand.vmem [shape: f32[34,512], index: 1, kind: input, shape index: {}]
  %s2 = inlined_call_operand.hbm [shape: f32[2,256,128], index: 2, kind: output, shape index: {0}]
  %s3 = inlined_call_operand.hbm [shape: f32[2,2,8,128], index: 3, kind: output, shape index: {1}]
  %4 = xla_tuple %s2, %s3
  %s5 = sld [smem:[#allocation0]]
  $region49: #{tpu_custom_call.1} parent=0
    _
  %s7 = ssub.s32 1, %s5
  %s8 = scalar_select 0, %s7, %s5
  $region1: #{tpu_custom_call.1} parent=0
    #allocation2 [shape = 'u8[131072]{0}', space=vmem, size = 0x20000, scoped, tag = 'output window, operand 0']
    #allocation3 [shape = 's32[2]{0}', space=sflag, size = 0x8, scoped, tag = 'scoped memory for tpu_custom_call.1']
    #allocation4 [shape = 'u8[8192]{0}', space=vmem, size = 0x2000, scoped, tag = 'output window, operand 1']
    #allocation5 [shape = 's32[2]{0}', space=sflag, size = 0x8, scoped, tag = 'scoped memory for tpu_custom_call.1']
    %9 = vsyncpa [#allocation3], 0
    %s10 = scalar_lea.sflag [#allocation3], 1
    %11 = vsyncpa %s10, 0
    %12 = vsyncpa [#allocation5], 0
    %s13 = scalar_lea.sflag [#allocation5], 1
    %14 = vsyncpa %s13, 0
    loop: start=0, step=1, limit=6
    $region2: #{tpu_custom_call.1} parent=1 // loop_pre_header
      _
    $region3: #{tpu_custom_call.1} parent=1 // loop_header
      %s16 = sphi 0, %s20
      %p17 = scmp.ge.s32.totalorder %s16, 6
      %s23 = sphi 0, %s35
      %s24 = sphi 0, %s31
      %s25 = sphi 0, %s23
      %s26 = sphi 0, %s24
      %s27 = sphi 0, %s25
      %s28 = sphi 0, %s26
      %s40 = sphi 0, %s42
      %s43 = sphi 0, %s40
      %s44 = sphi 0, %s43
      %s60 = sphi 0, %s44
      %s64 = sphi 0, %s64
      %s66 = sphi 0, %s64
      %s67 = sphi 0, %s66
      %s81 = sphi 0, %s67
      %s89 = sphi 0, %s91
      %s92 = sphi 0, %s89
      %s93 = sphi 0, %s92
      %s109 = sphi 0, %s93
      %s117 = sphi 0, %s119
      %s120 = sphi 0, %s117
      %s121 = sphi 0, %s120
      %s137 = sphi 0, %s121
    $region4: #{tpu_custom_call.1} parent=1 // loop_header_branch
      %19 = sbr.rel (%p17) target = $region8
    $region5: #{tpu_custom_call.1} parent=1 // loop_body
      %s21 = ssub.s32 %s16, 1
      %s22 = ssub.s32 %s16, 2
      %s29 = sadd.s32 1, %s24
      %p30 = scmp.ge.s32.totalorder %s29, 2
      %s31 = scalar_select %p30, 0, %s29
      %s32 = sadd.s32 1, %s23
      %s33 = scalar_select %p30, %s32, %s23
      %p34 = scmp.ge.s32.totalorder %s33, 2
      %s35 = scalar_select %p34, 0, %s33
      %s36 = ssub.s32 %s23, %s35
      %s37 = ssub.s32 %s24, %s31
      %s38 = sor.u32 %s36, %s37
      %p39 = scmp.eq.s32.totalorder %s38, 0
      %s41 = sadd.s32 %s40, 1
      %s42 = scalar_select %p39, %s40, %s41
      %p45 = pneg %p39
      %p46 = scmp.eq.s32.totalorder %s16, 3
      %p47 = por %p45, %p46
      %p48 = scmp.ne.s32.totalorder %s40, %s43
      %p49 = scmp.eq.s32.totalorder %s16, 0
      %p50 = por %p48, %p49
      %p51 = scmp.ne.s32.totalorder %s40, %s43
      %p52 = scmp.eq.s32.totalorder %s21, 3
      %p53 = por %p51, %p52
      %p54 = scmp.ne.s32.totalorder %s43, %s44
      %p55 = scmp.eq.s32.totalorder %s21, 0
      %p56 = por %p54, %p55
      %p57 = scmp.ne.s32.totalorder %s43, %s44
      %p58 = scmp.eq.s32.totalorder %s22, 3
      %p59 = por %p57, %p58
      %p61 = scmp.ne.s32.totalorder %s44, %s60
      %p62 = scmp.eq.s32.totalorder %s22, 0
      %p63 = por %p61, %p62
      %s65 = sadd.s32 %s64, 1
      %p68 = scmp.eq.s32.totalorder %s16, 3
      %p69 = scmp.ne.s32.totalorder %s64, %s66
      %p70 = scmp.eq.s32.totalorder %s16, 0
      %p71 = por %p69, %p70
      %p72 = scmp.ne.s32.totalorder %s64, %s66
      %p73 = scmp.eq.s32.totalorder %s21, 3
      %p74 = por %p72, %p73
      %p75 = scmp.ne.s32.totalorder %s66, %s67
      %p76 = scmp.eq.s32.totalorder %s21, 0
      %p77 = por %p75, %p76
      %p78 = scmp.ne.s32.totalorder %s66, %s67
      %p79 = scmp.eq.s32.totalorder %s22, 3
      %p80 = por %p78, %p79
      %p82 = scmp.ne.s32.totalorder %s67, %s81
      %p83 = scmp.eq.s32.totalorder %s22, 0
      %p84 = por %p82, %p83
      %s85 = ssub.s32 %s23, %s35
      %s86 = ssub.s32 %s24, %s31
      %s87 = sor.u32 %s85, %s86
      %p88 = scmp.eq.s32.totalorder %s87, 0
      %s90 = sadd.s32 %s89, 1
      %s91 = scalar_select %p88, %s89, %s90
      %p94 = pneg %p88
      %p95 = scmp.eq.s32.totalorder %s16, 3
      %p96 = por %p94, %p95
      %p97 = scmp.ne.s32.totalorder %s89, %s92
      %p98 = scmp.eq.s32.totalorder %s16, 0
      %p99 = por %p97, %p98
      %p100 = scmp.ne.s32.totalorder %s89, %s92
      %p101 = scmp.eq.s32.totalorder %s21, 3
      %p102 = por %p100, %p101
      %p103 = scmp.ne.s32.totalorder %s92, %s93
      %p104 = scmp.eq.s32.totalorder %s21, 0
      %p105 = por %p103, %p104
      %p106 = scmp.ne.s32.totalorder %s92, %s93
      %p107 = scmp.eq.s32.totalorder %s22, 3
      %p108 = por %p106, %p107
      %p110 = scmp.ne.s32.totalorder %s93, %s109
      %p111 = scmp.eq.s32.totalorder %s22, 0
      %p112 = por %p110, %p111
      %s113 = ssub.s32 %s23, %s35
      %s114 = ssub.s32 %s24, %s31
      %s115 = sor.u32 %s113, %s114
      %p116 = scmp.eq.s32.totalorder %s115, 0
      %s118 = sadd.s32 %s117, 1
      %s119 = scalar_select %p116, %s117, %s118
      %p122 = pneg %p116
      %p123 = scmp.eq.s32.totalorder %s16, 3
      %p124 = por %p122, %p123
      %p125 = scmp.ne.s32.totalorder %s117, %s120
      %p126 = scmp.eq.s32.totalorder %s16, 0
      %p127 = por %p125, %p126
      %p128 = scmp.ne.s32.totalorder %s117, %s120
      %p129 = scmp.eq.s32.totalorder %s21, 3
      %p130 = por %p128, %p129
      %p131 = scmp.ne.s32.totalorder %s120, %s121
      %p132 = scmp.eq.s32.totalorder %s21, 0
      %p133 = por %p131, %p132
      %p134 = scmp.ne.s32.totalorder %s120, %s121
      %p135 = scmp.eq.s32.totalorder %s22, 3
      %p136 = por %p134, %p135
      %p138 = scmp.ne.s32.totalorder %s121, %s137
      %p139 = scmp.eq.s32.totalorder %s22, 0
      %p140 = por %p138, %p139
      %p141 = scmp.le.s32.totalorder 1, %s16
      %p142 = scmp.lt.s32.totalorder %s16, 5
      %p143 = pnand %p141, %p142
      %p144 = pneg %p143
      // Predicated region
      $region9: #{tpu_custom_call.1} parent=5 // pred_check
        _
      $region10: #{tpu_custom_call.1} parent=5 // pred_check_branch
        %146 = sbr.rel (%p143) target = $region12
      $region11: #{tpu_custom_call.1} parent=5 // pred_region
        %s147 = ssub.s32 %s16, 1
        // Predicated region
        $region13: #{tpu_custom_call.1} parent=11 // pred_check
          %p148 = pneg %p77
        $region14: #{tpu_custom_call.1} parent=11 // pred_check_branch
          %150 = sbr.rel (%p148) target = $region16
        $region15: #{tpu_custom_call.1} parent=11 // pred_region
          _
        $region16: #{tpu_custom_call.1} parent=11 // pred_fallthru
          _
      $region12: #{tpu_custom_call.1} parent=5 // pred_fallthru
        _
      %p151 = scmp.lt.s32.totalorder %s16, 4
      // Predicated region
      $region17: #{tpu_custom_call.1} parent=5 // pred_check
        %p152 = pneg %p151
      $region18: #{tpu_custom_call.1} parent=5 // pred_check_branch
        %154 = sbr.rel (%p152) target = $region20
      $region19: #{tpu_custom_call.1} parent=5 // pred_region
        // Predicated region
        $region21: #{tpu_custom_call.1} parent=19 // pred_check
          %p155 = pneg %p50
        $region22: #{tpu_custom_call.1} parent=19 // pred_check_branch
          %157 = sbr.rel (%p155) target = $region24
        $region23: #{tpu_custom_call.1} parent=19 // pred_region
          %s158 = smul.u32 16, %s24
          %p159 = scmp.lt.s32.totalorder %s23, 1
          %s160 = scalar_select %p159, %s23, 1
          %p161 = scmp.lt.s32.totalorder %s158, 31
          %s162 = scalar_select %p161, %s158, 31
          %s163 = smul.addr %s160, 32
          %s164 = sadd.s32 %s162, %s163
          %s165 = smul.addr %s164, 8
          %s166 = scalar_lea.vmem %s0, %s165
          %s167 = smul.u32 16, %s24
        $region24: #{tpu_custom_call.1} parent=19 // pred_fallthru
          _
      $region20: #{tpu_custom_call.1} parent=5 // pred_fallthru
        _
      %p168 = scmp.le.s32.totalorder 1, %s16
      %p169 = scmp.lt.s32.totalorder %s16, 5
      %p170 = pnand %p168, %p169
      %p171 = pneg %p170
      // Predicated region
      $region25: #{tpu_custom_call.1} parent=5 // pred_check
        _
      $region26: #{tpu_custom_call.1} parent=5 // pred_check_branch
        %173 = sbr.rel (%p170) target = $region28
      $region27: #{tpu_custom_call.1} parent=5 // pred_region
        %s174 = ssub.s32 %s16, 1
        %s175 = smul.u32 16, %s26
        %p176 = scmp.lt.s32.totalorder %s25, 1
        %s177 = scalar_select %p176, %s25, 1
        %p178 = scmp.lt.s32.totalorder %s175, 31
        %s179 = scalar_select %p178, %s175, 31
        %s180 = smul.addr %s177, 32
        %s181 = sadd.s32 %s179, %s180
        %s182 = smul.addr %s181, 8
        %s183 = scalar_lea.vmem %s0, %s182
        %p184 = pneg %p56
        %p185 = pneg %p53
        %p186 = pneg %p77
        %p187 = pneg %p74
        %p188 = pneg %p105
        %p189 = pneg %p102
        %s190 = sand.u32 %s92, 1
        %s191 = scalar_lea.sflag [#allocation3], %s190
        %s192 = sand.u32 %s92, 1
        %s193 = smul.addr %s192, 128
        %s194 = scalar_lea.vmem [#allocation2], %s193
        %p195 = pneg %p133
        %p196 = pneg %p130
        %s197 = sand.u32 %s120, 1
        %s198 = scalar_lea.sflag [#allocation5], %s197
        %s199 = sand.u32 %s120, 1
        %s200 = smul.addr %s199, 8
        %s201 = scalar_lea.vmem [#allocation4], %s200
        %s202 = smul.u32 16, %s26
        %p203 = scmp.lt.s32.totalorder %s25, 1
        %s204 = scalar_select %p203, %s25, 1
        %p205 = scmp.lt.s32.totalorder %s202, 31
        %s206 = scalar_select %p205, %s202, 31
        %s207 = smul.addr %s204, 32
        %s208 = sadd.s32 %s206, %s207
        %s209 = smul.addr %s208, 8
        %s210 = scalar_lea.vmem %s0, %s209
        %s211 = smul.u32 16, %s26
        %s212 = smul.u32 16, %s26
        %v213 = vld [vmem:[%s210] sm:$0xff]
        %v214 = vld [vmem:[%s210 + $0x8] sm:$0xff]
        %v215 = vld [vmem:[%s210 + $0x10] sm:$0xff]
        %v216 = vld [vmem:[%s210 + $0x18] sm:$0xff]
        %v217 = vld [vmem:[%s210 + $0x20] sm:$0xff]
        %v218 = vld [vmem:[%s210 + $0x28] sm:$0xff]
        %v219 = vld [vmem:[%s210 + $0x30] sm:$0xff]
        %v220 = vld [vmem:[%s210 + $0x38] sm:$0xff]
        %v221 = vld [vmem:[%s210 + $0x40] sm:$0xff]
        %v222 = vld [vmem:[%s210 + $0x48] sm:$0xff]
        %v223 = vld [vmem:[%s210 + $0x50] sm:$0xff]
        %v224 = vld [vmem:[%s210 + $0x58] sm:$0xff]
        %v225 = vld [vmem:[%s210 + $0x60] sm:$0xff]
        %v226 = vld [vmem:[%s210 + $0x68] sm:$0xff]
        %v227 = vld [vmem:[%s210 + $0x70] sm:$0xff]
        %v228 = vld [vmem:[%s210 + $0x78] sm:$0xff]
        %v229 = vld [vmem:[%s1] sm:$0xff]
        %v230 = vld [vmem:[%s1 + $0x8] sm:$0xff]
        %v231 = vld [vmem:[%s1 + $0x10] sm:$0xff]
        %v232 = vld [vmem:[%s1 + $0x18] sm:$0xff]
        %v233 = vld [vmem:[%s1 + $0x20] sm:$0xff]
        %v234 = vld [vmem:[%s1 + $0x28] sm:$0xff]
        %v235 = vld [vmem:[%s1 + $0x30] sm:$0xff]
        %v236 = vld [vmem:[%s1 + $0x38] sm:$0xff]
        %v237 = vld [vmem:[%s1 + $0x40] sm:$0xff]
        %v238 = vld [vmem:[%s1 + $0x48] sm:$0xff]
        %v239 = vld [vmem:[%s1 + $0x50] sm:$0xff]
        %v240 = vld [vmem:[%s1 + $0x58] sm:$0xff]
        %v241 = vld [vmem:[%s1 + $0x60] sm:$0xff]
        %v242 = vld [vmem:[%s1 + $0x68] sm:$0xff]
        %v243 = vld [vmem:[%s1 + $0x70] sm:$0xff]
        %v244 = vld [vmem:[%s1 + $0x78] sm:$0xff]
        %v245 = vld [vmem:[%s1 + $0x80] sm:$0x3]
        %v246 = vld [vmem:[%s1 + $0x88] sm:$0x3]
        %v247 = vld [vmem:[%s1 + $0x90] sm:$0x3]
        %v248 = vld [vmem:[%s1 + $0x98] sm:$0x3]
        %vm249 = vcmask 277504
        %v251 = vsel %vm249, %v213, 0
        %v254 = vsel %vm249, %v214, 0
        %v257 = vsel %vm249, %v215, 0
        %v260 = vsel %vm249, %v216, 0
        %v263 = vsel %vm249, %v217, 0
        %v266 = vsel %vm249, %v218, 0
        %v269 = vsel %vm249, %v219, 0
        %v272 = vsel %vm249, %v220, 0
        %v275 = vsel %vm249, %v221, 0
        %v278 = vsel %vm249, %v222, 0
        %v281 = vsel %vm249, %v223, 0
        %v284 = vsel %vm249, %v224, 0
        %v287 = vsel %vm249, %v225, 0
        %v290 = vsel %vm249, %v226, 0
        %v293 = vsel %vm249, %v227, 0
        %v296 = vsel %vm249, %v228, 0
        %vm298 = vcmask 1041408
        %v300 = vsel %vm298, %v245, 0
        %v303 = vsel %vm298, %v246, 0
        %v306 = vsel %vm298, %v247, 0
        %v309 = vsel %vm298, %v248, 0
        %311 = vmatprep.subr.mxu0 %v230
        %312 = vmatpush1.msra.mxu0 %v229
        %313 = vmatprep.subr.mxu0 %v234
        %314 = vmatpush1.msra.mxu0 %v233
        %315 = vmatprep.subr.mxu0 %v238
        %316 = vmatpush1.msra.mxu0 %v237
        %317 = vmatprep.subr.mxu0 %v242
        %318 = vmatpush1.msra.mxu0 %v241
        %319 = vmatprep.subr.mxu0 %v303
        %320 = vmatpush1.msra.mxu0 %v300
        %321 = vmatprep.subr.mxu0 0.0
        %322 = vmatpush1.msra.mxu0 0.0
        %323 = vmatprep.subr.mxu0 0.0
        %324 = vmatpush1.msra.mxu0 0.0
        %325 = vmatprep.subr.mxu0 0.0
        %326 = vmatpush1.msra.mxu0 0.0
        %327 = vmatprep.subr.mxu0 0.0
        %328 = vmatpush1.msra.mxu0 0.0
        %329 = vmatprep.subr.mxu0 0.0
        %330 = vmatpush1.msra.mxu0 0.0
        %331 = vmatprep.subr.mxu0 0.0
        %332 = vmatpush1.msra.mxu0 0.0
        %333 = vmatprep.subr.mxu0 0.0
        %334 = vmatpush1.msra.mxu0 0.0
        %335 = vmatprep.subr.mxu0 0.0
        %336 = vmatpush1.msra.mxu0 0.0
        %337 = vmatprep.subr.mxu0 0.0
        %338 = vmatpush1.msra.mxu0 0.0
        %339 = vmatprep.subr.mxu0 0.0
        %340 = vmatpush1.msra.mxu0 0.0
        %341 = vmatprep.subr.mxu0 0.0
        %342 = vmatpush1.msra.mxu0 0.0
        %343 = vmatprep.subr.mxu0 0.0
        %344 = vmatpush1.msra.mxu0 0.0
        %345 = vmatprep.subr.mxu0 0.0
        %346 = vmatpush1.msra.mxu0 0.0
        %347 = vmatprep.subr.mxu0 0.0
        %348 = vmatpush1.msra.mxu0 0.0
        %349 = vmatprep.subr.mxu0 0.0
        %350 = vmatpush1.msra.mxu0 0.0
        %351 = vmatprep.subr.mxu0 0.0
        %352 = vmatpush1.msra.mxu0 0.0
        %353 = vmatprep.subr.mxu0 0.0
        %354 = vmatpush1.msra.mxu0 0.0
        %355 = vmatprep.subr.mxu0 0.0
        %356 = vmatpush1.msra.mxu0 0.0
        %357 = vmatprep.subr.mxu0 0.0
        %358 = vmatpush1.msra.mxu0 0.0
        %359 = vmatprep.subr.mxu0 0.0
        %360 = vmatpush1.msra.mxu0 0.0
        %361 = vmatprep.subr.mxu0 0.0
        %362 = vmatpush1.msra.mxu0 0.0
        %363 = vmatprep.subr.mxu0 0.0
        %364 = vmatpush1.msra.mxu0 0.0
        %365 = vmatprep.subr.mxu0 0.0
        %366 = vmatpush1.msra.mxu0 0.0
        %367 = vmatprep.subr.mxu0 0.0
        %368 = vmatpush1.msra.mxu0 0.0
        %369 = vmatprep.subr.mxu0 0.0
        %370 = vmatpush1.msra.mxu0 0.0
        %371 = vmatprep.subr.mxu0 0.0
        %372 = vmatpush1.msra.mxu0 0.0
        %373 = vmatprep.subr.mxu0 0.0
        %374 = vmatpush1.msra.mxu0 0.0
        %375 = vmatprep.mubr.f32.mxu0 0.0
        %376 = vmatmul.mubr.f32.gmra.mrb[0].mxu0 %v251
        %v377 = vpop.f32.mrb[0].mxu0
        %v378 = vadd.f32 0.0, %v377
        %v379 = vpop.f32.mrb[0].mxu0
        %v380 = vadd.f32 0.0, %v379
        %381 = vmatprep.mubr.f32.mxu0 0.0
        %382 = vmatmul.mubr.f32.gmra.mrb[0].mxu0 %v254
        %v383 = vpop.f32.mrb[0].mxu0
        %v384 = vadd.f32 0.0, %v383
        %v385 = vpop.f32.mrb[0].mxu0
        %v386 = vadd.f32 0.0, %v385
        %387 = vmatprep.mubr.f32.mxu0 0.0
        %388 = vmatmul.mubr.f32.gmra.mrb[0].mxu0 %v257
        %v389 = vpop.f32.mrb[0].mxu0
        %v390 = vadd.f32 0.0, %v389
        %v391 = vpop.f32.mrb[0].mxu0
        %v392 = vadd.f32 0.0, %v391
        %393 = vmatprep.mubr.f32.mxu0 0.0
        %394 = vmatmul.mubr.f32.gmra.mrb[0].mxu0 %v260
        %v395 = vpop.f32.mrb[0].mxu0
        %v396 = vadd.f32 0.0, %v395
        %v397 = vpop.f32.mrb[0].mxu0
        %v398 = vadd.f32 0.0, %v397
        %399 = vmatprep.mubr.f32.mxu0 0.0
        %400 = vmatmul.mubr.f32.gmra.mrb[0].mxu0 %v263
        %v401 = vpop.f32.mrb[0].mxu0
        %v402 = vadd.f32 0.0, %v401
        %v403 = vpop.f32.mrb[0].mxu0
        %v404 = vadd.f32 0.0, %v403
        %405 = vmatprep.mubr.f32.mxu0 0.0
        %406 = vmatmul.mubr.f32.gmra.mrb[0].mxu0 %v266
        %v407 = vpop.f32.mrb[0].mxu0
        %v408 = vadd.f32 0.0, %v407
        %v409 = vpop.f32.mrb[0].mxu0
        %v410 = vadd.f32 0.0, %v409
        %411 = vmatprep.mubr.f32.mxu0 0.0
        %412 = vmatmul.mubr.f32.gmra.mrb[0].mxu0 %v269
        %v413 = vpop.f32.mrb[0].mxu0
        %v414 = vadd.f32 0.0, %v413
        %v415 = vpop.f32.mrb[0].mxu0
        %v416 = vadd.f32 0.0, %v415
        %417 = vmatprep.mubr.f32.mxu0 0.0
        %418 = vmatmul.mubr.f32.gmra.mrb[0].mxu0 %v272
        %v419 = vpop.f32.mrb[0].mxu0
        %v420 = vadd.f32 0.0, %v419
        %v421 = vpop.f32.mrb[0].mxu0
        %v422 = vadd.f32 0.0, %v421
        %423 = vmatprep.mubr.f32.mxu0 0.0
        %424 = vmatmul.mubr.f32.gmra.mrb[0].mxu0 %v275
        %v425 = vpop.f32.mrb[0].mxu0
        %v426 = vadd.f32 0.0, %v425
        %v427 = vpop.f32.mrb[0].mxu0
        %v428 = vadd.f32 0.0, %v427
        %429 = vmatprep.mubr.f32.mxu0 0.0
        %430 = vmatmul.mubr.f32.gmra.mrb[0].mxu0 %v278
        %v431 = vpop.f32.mrb[0].mxu0
        %v432 = vadd.f32 0.0, %v431
        %v433 = vpop.f32.mrb[0].mxu0
        %v434 = vadd.f32 0.0, %v433
        %435 = vmatprep.mubr.f32.mxu0 0.0
        %436 = vmatmul.mubr.f32.gmra.mrb[0].mxu0 %v281
        %v437 = vpop.f32.mrb[0].mxu0
        %v438 = vadd.f32 0.0, %v437
        %v439 = vpop.f32.mrb[0].mxu0
        %v440 = vadd.f32 0.0, %v439
        %441 = vmatprep.mubr.f32.mxu0 0.0
        %442 = vmatmul.mubr.f32.gmra.mrb[0].mxu0 %v284
        %v443 = vpop.f32.mrb[0].mxu0
        %v444 = vadd.f32 0.0, %v443
        %v445 = vpop.f32.mrb[0].mxu0
        %v446 = vadd.f32 0.0, %v445
        %447 = vmatprep.mubr.f32.mxu0 0.0
        %448 = vmatmul.mubr.f32.gmra.mrb[0].mxu0 %v287
        %v449 = vpop.f32.mrb[0].mxu0
        %v450 = vadd.f32 0.0, %v449
        %v451 = vpop.f32.mrb[0].mxu0
        %v452 = vadd.f32 0.0, %v451
        %453 = vmatprep.mubr.f32.mxu0 0.0
        %454 = vmatmul.mubr.f32.gmra.mrb[0].mxu0 %v290
        %v455 = vpop.f32.mrb[0].mxu0
        %v456 = vadd.f32 0.0, %v455
        %v457 = vpop.f32.mrb[0].mxu0
        %v458 = vadd.f32 0.0, %v457
        %459 = vmatprep.mubr.f32.mxu0 0.0
        %460 = vmatmul.mubr.f32.gmra.mrb[0].mxu0 %v293
        %v461 = vpop.f32.mrb[0].mxu0
        %v462 = vadd.f32 0.0, %v461
        %v463 = vpop.f32.mrb[0].mxu0
        %v464 = vadd.f32 0.0, %v463
        %465 = vmatprep.mubr.f32.mxu0 0.0
        %466 = vmatmul.mubr.f32.gmra.mrb[0].mxu0 %v296
        %v467 = vpop.f32.mrb[0].mxu0
        %v468 = vadd.f32 0.0, %v467
        %v469 = vpop.f32.mrb[0].mxu0
        %v470 = vadd.f32 0.0, %v469
        %471 = vdwg.mxu0
        %472 = vmatprep.subr.mxu0 %v232
        %473 = vmatpush1.msra.mxu0 %v231
        %474 = vmatprep.subr.mxu0 %v236
        %475 = vmatpush1.msra.mxu0 %v235
        %476 = vmatprep.subr.mxu0 %v240
        %477 = vmatpush1.msra.mxu0 %v239
        %478 = vmatprep.subr.mxu0 %v244
        %479 = vmatpush1.msra.mxu0 %v243
        %480 = vmatprep.subr.mxu0 %v309
        %481 = vmatpush1.msra.mxu0 %v306
        %482 = vmatprep.subr.mxu0 0.0
        %483 = vmatpush1.msra.mxu0 0.0
        %484 = vmatprep.subr.mxu0 0.0
        %485 = vmatpush1.msra.mxu0 0.0
        %486 = vmatprep.subr.mxu0 0.0
        %487 = vmatpush1.msra.mxu0 0.0
        %488 = vmatprep.subr.mxu0 0.0
        %489 = vmatpush1.msra.mxu0 0.0
        %490 = vmatprep.subr.mxu0 0.0
        %491 = vmatpush1.msra.mxu0 0.0
        %492 = vmatprep.subr.mxu0 0.0
        %493 = vmatpush1.msra.mxu0 0.0
        %494 = vmatprep.subr.mxu0 0.0
        %495 = vmatpush1.msra.mxu0 0.0
        %496 = vmatprep.subr.mxu0 0.0
        %497 = vmatpush1.msra.mxu0 0.0
        %498 = vmatprep.subr.mxu0 0.0
        %499 = vmatpush1.msra.mxu0 0.0
        %500 = vmatprep.subr.mxu0 0.0
        %501 = vmatpush1.msra.mxu0 0.0
        %502 = vmatprep.subr.mxu0 0.0
        %503 = vmatpush1.msra.mxu0 0.0
        %504 = vmatprep.subr.mxu0 0.0
        %505 = vmatpush1.msra.mxu0 0.0
        %506 = vmatprep.subr.mxu0 0.0
        %507 = vmatpush1.msra.mxu0 0.0
        %508 = vmatprep.subr.mxu0 0.0
        %509 = vmatpush1.msra.mxu0 0.0
        %510 = vmatprep.subr.mxu0 0.0
        %511 = vmatpush1.msra.mxu0 0.0
        %512 = vmatprep.subr.mxu0 0.0
        %513 = vmatpush1.msra.mxu0 0.0
        %514 = vmatprep.subr.mxu0 0.0
        %515 = vmatpush1.msra.mxu0 0.0
        %516 = vmatprep.subr.mxu0 0.0
        %517 = vmatpush1.msra.mxu0 0.0
        %518 = vmatprep.subr.mxu0 0.0
        %519 = vmatpush1.msra.mxu0 0.0
        %520 = vmatprep.subr.mxu0 0.0
        %521 = vmatpush1.msra.mxu0 0.0
        %522 = vmatprep.subr.mxu0 0.0
        %523 = vmatpush1.msra.mxu0 0.0
        %524 = vmatprep.subr.mxu0 0.0
        %525 = vmatpush1.msra.mxu0 0.0
        %526 = vmatprep.subr.mxu0 0.0
        %527 = vmatpush1.msra.mxu0 0.0
        %528 = vmatprep.subr.mxu0 0.0
        %529 = vmatpush1.msra.mxu0 0.0
        %530 = vmatprep.subr.mxu0 0.0
        %531 = vmatpush1.msra.mxu0 0.0
        %532 = vmatprep.subr.mxu0 0.0
        %533 = vmatpush1.msra.mxu0 0.0
        %534 = vmatprep.subr.mxu0 0.0
        %535 = vmatpush1.msra.mxu0 0.0
        %536 = vmatprep.mubr.f32.mxu0 0.0
        %537 = vmatmul.mubr.f32.gmra.mrb[0].mxu0 %v251
        %v538 = vpop.f32.mrb[0].mxu0
        %v539 = vadd.f32 0.0, %v538
        %v540 = vpop.f32.mrb[0].mxu0
        %v541 = vadd.f32 0.0, %v540
        %542 = vmatprep.mubr.f32.mxu0 0.0
        %543 = vmatmul.mubr.f32.gmra.mrb[0].mxu0 %v254
        %v544 = vpop.f32.mrb[0].mxu0
        %v545 = vadd.f32 0.0, %v544
        %v546 = vpop.f32.mrb[0].mxu0
        %v547 = vadd.f32 0.0, %v546
        %548 = vmatprep.mubr.f32.mxu0 0.0
        %549 = vmatmul.mubr.f32.gmra.mrb[0].mxu0 %v257
        %v550 = vpop.f32.mrb[0].mxu0
        %v551 = vadd.f32 0.0, %v550
        %v552 = vpop.f32.mrb[0].mxu0
        %v553 = vadd.f32 0.0, %v552
        %554 = vmatprep.mubr.f32.mxu0 0.0
        %555 = vmatmul.mubr.f32.gmra.mrb[0].mxu0 %v260
        %v556 = vpop.f32.mrb[0].mxu0
        %v557 = vadd.f32 0.0, %v556
        %v558 = vpop.f32.mrb[0].mxu0
        %v559 = vadd.f32 0.0, %v558
        %560 = vmatprep.mubr.f32.mxu0 0.0
        %561 = vmatmul.mubr.f32.gmra.mrb[0].mxu0 %v263
        %v562 = vpop.f32.mrb[0].mxu0
        %v563 = vadd.f32 0.0, %v562
        %v564 = vpop.f32.mrb[0].mxu0
        %v565 = vadd.f32 0.0, %v564
        %566 = vmatprep.mubr.f32.mxu0 0.0
        %567 = vmatmul.mubr.f32.gmra.mrb[0].mxu0 %v266
        %v568 = vpop.f32.mrb[0].mxu0
        %v569 = vadd.f32 0.0, %v568
        %v570 = vpop.f32.mrb[0].mxu0
        %v571 = vadd.f32 0.0, %v570
        %572 = vmatprep.mubr.f32.mxu0 0.0
        %573 = vmatmul.mubr.f32.gmra.mrb[0].mxu0 %v269
        %v574 = vpop.f32.mrb[0].mxu0
        %v575 = vadd.f32 0.0, %v574
        %v576 = vpop.f32.mrb[0].mxu0
        %v577 = vadd.f32 0.0, %v576
        %578 = vmatprep.mubr.f32.mxu0 0.0
        %579 = vmatmul.mubr.f32.gmra.mrb[0].mxu0 %v272
        %v580 = vpop.f32.mrb[0].mxu0
        %v581 = vadd.f32 0.0, %v580
        %v582 = vpop.f32.mrb[0].mxu0
        %v583 = vadd.f32 0.0, %v582
        %584 = vmatprep.mubr.f32.mxu0 0.0
        %585 = vmatmul.mubr.f32.gmra.mrb[0].mxu0 %v275
        %v586 = vpop.f32.mrb[0].mxu0
        %v587 = vadd.f32 0.0, %v586
        %v588 = vpop.f32.mrb[0].mxu0
        %v589 = vadd.f32 0.0, %v588
        %590 = vmatprep.mubr.f32.mxu0 0.0
        %591 = vmatmul.mubr.f32.gmra.mrb[0].mxu0 %v278
        %v592 = vpop.f32.mrb[0].mxu0
        %v593 = vadd.f32 0.0, %v592
        %v594 = vpop.f32.mrb[0].mxu0
        %v595 = vadd.f32 0.0, %v594
        %596 = vmatprep.mubr.f32.mxu0 0.0
        %597 = vmatmul.mubr.f32.gmra.mrb[0].mxu0 %v281
        %v598 = vpop.f32.mrb[0].mxu0
        %v599 = vadd.f32 0.0, %v598
        %v600 = vpop.f32.mrb[0].mxu0
        %v601 = vadd.f32 0.0, %v600
        %602 = vmatprep.mubr.f32.mxu0 0.0
        %603 = vmatmul.mubr.f32.gmra.mrb[0].mxu0 %v284
        %v604 = vpop.f32.mrb[0].mxu0
        %v605 = vadd.f32 0.0, %v604
        %v606 = vpop.f32.mrb[0].mxu0
        %v607 = vadd.f32 0.0, %v606
        %608 = vmatprep.mubr.f32.mxu0 0.0
        %609 = vmatmul.mubr.f32.gmra.mrb[0].mxu0 %v287
        %v610 = vpop.f32.mrb[0].mxu0
        %v611 = vadd.f32 0.0, %v610
        %v612 = vpop.f32.mrb[0].mxu0
        %v613 = vadd.f32 0.0, %v612
        %614 = vmatprep.mubr.f32.mxu0 0.0
        %615 = vmatmul.mubr.f32.gmra.mrb[0].mxu0 %v290
        %v616 = vpop.f32.mrb[0].mxu0
        %v617 = vadd.f32 0.0, %v616
        %v618 = vpop.f32.mrb[0].mxu0
        %v619 = vadd.f32 0.0, %v618
        %620 = vmatprep.mubr.f32.mxu0 0.0
        %621 = vmatmul.mubr.f32.gmra.mrb[0].mxu0 %v293
        %v622 = vpop.f32.mrb[0].mxu0
        %v623 = vadd.f32 0.0, %v622
        %v624 = vpop.f32.mrb[0].mxu0
        %v625 = vadd.f32 0.0, %v624
        %626 = vmatprep.mubr.f32.mxu0 0.0
        %627 = vmatmul.mubr.f32.gmra.mrb[0].mxu0 %v296
        %v628 = vpop.f32.mrb[0].mxu0
        %v629 = vadd.f32 0.0, %v628
        %v630 = vpop.f32.mrb[0].mxu0
        %v631 = vadd.f32 0.0, %v630
        %632 = vdwg.mxu0
        %v633 = vlaneseq
        %v634 = vshrl.u32 %v633, 7
        %v635 = vadd.s32 %v634, 8
        %v636 = vadd.s32 %v634, 16
        %v637 = vadd.s32 %v634, 24
        %v638 = vadd.s32 %v634, 32
        %v639 = vadd.s32 %v634, 40
        %v640 = vadd.s32 %v634, 48
        %v641 = vadd.s32 %v634, 56
        %v642 = vadd.s32 %v634, 64
        %v643 = vadd.s32 %v634, 72
        %v644 = vadd.s32 %v634, 80
        %v645 = vadd.s32 %v634, 88
        %v646 = vadd.s32 %v634, 96
        %v647 = vadd.s32 %v634, 104
        %v648 = vadd.s32 %v634, 112
        %v649 = vadd.s32 %v634, 120
        %v650 = vrot.slane %v380, 7
        %v651 = vrot.slane %v386, 7
        %v652 = vrot.slane %v392, 7
        %v653 = vrot.slane %v398, 7
        %v654 = vrot.slane %v404, 7
        %v655 = vrot.slane %v410, 7
        %v656 = vrot.slane %v416, 7
        %v657 = vrot.slane %v422, 7
        %v658 = vrot.slane %v428, 7
        %v659 = vrot.slane %v434, 7
        %v660 = vrot.slane %v440, 7
        %v661 = vrot.slane %v446, 7
        %v662 = vrot.slane %v452, 7
        %v663 = vrot.slane %v458, 7
        %v664 = vrot.slane %v464, 7
        %v665 = vrot.slane %v470, 7
        %vm666 = vcmp.lt.s32.totalorder %v634, 1
        %v667 = vsel %vm666, %v664, %v665
        %v668 = vsel %vm666, %v663, %v664
        %v669 = vsel %vm666, %v662, %v663
        %v670 = vsel %vm666, %v661, %v662
        %v671 = vsel %vm666, %v660, %v661
        %v672 = vsel %vm666, %v659, %v660
        %v673 = vsel %vm666, %v658, %v659
        %v674 = vsel %vm666, %v657, %v658
        %v675 = vsel %vm666, %v656, %v657
        %v676 = vsel %vm666, %v655, %v656
        %v677 = vsel %vm666, %v654, %v655
        %v678 = vsel %vm666, %v653, %v654
        %v679 = vsel %vm666, %v652, %v653
        %v680 = vsel %vm666, %v651, %v652
        %v681 = vsel %vm666, %v650, %v651
        %v682 = vsel %vm666, %v665, %v650
        %vm683 = vcmp.ge.s32.totalorder %v634, 1
        %vm684 = vcmp.ge.s32.totalorder %v635, 1
        %vm685 = vcmp.ge.s32.totalorder %v636, 1
        %vm686 = vcmp.ge.s32.totalorder %v637, 1
        %vm687 = vcmp.ge.s32.totalorder %v638, 1
        %vm688 = vcmp.ge.s32.totalorder %v639, 1
        %vm689 = vcmp.ge.s32.totalorder %v640, 1
        %vm690 = vcmp.ge.s32.totalorder %v641, 1
        %vm691 = vcmp.ge.s32.totalorder %v642, 1
        %vm692 = vcmp.ge.s32.totalorder %v643, 1
        %vm693 = vcmp.ge.s32.totalorder %v644, 1
        %vm694 = vcmp.ge.s32.totalorder %v645, 1
        %vm695 = vcmp.ge.s32.totalorder %v646, 1
        %vm696 = vcmp.ge.s32.totalorder %v647, 1
        %vm697 = vcmp.ge.s32.totalorder %v648, 1
        %vm698 = vcmp.ge.s32.totalorder %v649, 1
        %v699 = vsel %vm683, %v682, 0.0
        %v700 = vsel %vm684, %v681, 0.0
        %v701 = vsel %vm685, %v680, 0.0
        %v702 = vsel %vm686, %v679, 0.0
        %v703 = vsel %vm687, %v678, 0.0
        %v704 = vsel %vm688, %v677, 0.0
        %v705 = vsel %vm689, %v676, 0.0
        %v706 = vsel %vm690, %v675, 0.0
        %v707 = vsel %vm691, %v674, 0.0
        %v708 = vsel %vm692, %v673, 0.0
        %v709 = vsel %vm693, %v672, 0.0
        %v710 = vsel %vm694, %v671, 0.0
        %v711 = vsel %vm695, %v670, 0.0
        %v712 = vsel %vm696, %v669, 0.0
        %v713 = vsel %vm697, %v668, 0.0
        %v714 = vsel %vm698, %v667, 0.0
        %v715 = vadd.f32 %v378, %v699
        %v716 = vadd.f32 %v384, %v700
        %v717 = vadd.f32 %v390, %v701
        %v718 = vadd.f32 %v396, %v702
        %v719 = vadd.f32 %v402, %v703
        %v720 = vadd.f32 %v408, %v704
        %v721 = vadd.f32 %v414, %v705
        %v722 = vadd.f32 %v420, %v706
        %v723 = vadd.f32 %v426, %v707
        %v724 = vadd.f32 %v432, %v708
        %v725 = vadd.f32 %v438, %v709
        %v726 = vadd.f32 %v444, %v710
        %v727 = vadd.f32 %v450, %v711
        %v728 = vadd.f32 %v456, %v712
        %v729 = vadd.f32 %v462, %v713
        %v730 = vadd.f32 %v468, %v714
        %v731 = vsel %vm666, %v682, 0.0
        %v732 = vadd.f32 %v731, 0.0
        %v733 = vrot.slane %v539, 6
        %v734 = vrot.slane %v545, 6
        %v735 = vrot.slane %v551, 6
        %v736 = vrot.slane %v557, 6
        %v737 = vrot.slane %v563, 6
        %v738 = vrot.slane %v569, 6
        %v739 = vrot.slane %v575, 6
        %v740 = vrot.slane %v581, 6
        %v741 = vrot.slane %v587, 6
        %v742 = vrot.slane %v593, 6
        %v743 = vrot.slane %v599, 6
        %v744 = vrot.slane %v605, 6
        %v745 = vrot.slane %v611, 6
        %v746 = vrot.slane %v617, 6
        %v747 = vrot.slane %v623, 6
        %v748 = vrot.slane %v629, 6
        %vm749 = vcmp.lt.s32.totalorder %v634, 2
        %v750 = vsel %vm749, %v747, %v748
        %v751 = vsel %vm749, %v746, %v747
        %v752 = vsel %vm749, %v745, %v746
        %v753 = vsel %vm749, %v744, %v745
        %v754 = vsel %vm749, %v743, %v744
        %v755 = vsel %vm749, %v742, %v743
        %v756 = vsel %vm749, %v741, %v742
        %v757 = vsel %vm749, %v740, %v741
        %v758 = vsel %vm749, %v739, %v740
        %v759 = vsel %vm749, %v738, %v739
        %v760 = vsel %vm749, %v737, %v738
        %v761 = vsel %vm749, %v736, %v737
        %v762 = vsel %vm749, %v735, %v736
        %v763 = vsel %vm749, %v734, %v735
        %v764 = vsel %vm749, %v733, %v734
        %v765 = vsel %vm749, %v748, %v733
        %vm766 = vcmp.ge.s32.totalorder %v634, 2
        %vm767 = vcmp.ge.s32.totalorder %v635, 2
        %vm768 = vcmp.ge.s32.totalorder %v636, 2
        %vm769 = vcmp.ge.s32.totalorder %v637, 2
        %vm770 = vcmp.ge.s32.totalorder %v638, 2
        %vm771 = vcmp.ge.s32.totalorder %v639, 2
        %vm772 = vcmp.ge.s32.totalorder %v640, 2
        %vm773 = vcmp.ge.s32.totalorder %v641, 2
        %vm774 = vcmp.ge.s32.totalorder %v642, 2
        %vm775 = vcmp.ge.s32.totalorder %v643, 2
        %vm776 = vcmp.ge.s32.totalorder %v644, 2
        %vm777 = vcmp.ge.s32.totalorder %v645, 2
        %vm778 = vcmp.ge.s32.totalorder %v646, 2
        %vm779 = vcmp.ge.s32.totalorder %v647, 2
        %vm780 = vcmp.ge.s32.totalorder %v648, 2
        %vm781 = vcmp.ge.s32.totalorder %v649, 2
        %v782 = vsel %vm766, %v765, 0.0
        %v783 = vsel %vm767, %v764, 0.0
        %v784 = vsel %vm768, %v763, 0.0
        %v785 = vsel %vm769, %v762, 0.0
        %v786 = vsel %vm770, %v761, 0.0
        %v787 = vsel %vm771, %v760, 0.0
        %v788 = vsel %vm772, %v759, 0.0
        %v789 = vsel %vm773, %v758, 0.0
        %v790 = vsel %vm774, %v757, 0.0
        %v791 = vsel %vm775, %v756, 0.0
        %v792 = vsel %vm776, %v755, 0.0
        %v793 = vsel %vm777, %v754, 0.0
        %v794 = vsel %vm778, %v753, 0.0
        %v795 = vsel %vm779, %v752, 0.0
        %v796 = vsel %vm780, %v751, 0.0
        %v797 = vsel %vm781, %v750, 0.0
        %v798 = vadd.f32 %v715, %v782
        %v799 = vadd.f32 %v716, %v783
        %v800 = vadd.f32 %v717, %v784
        %v801 = vadd.f32 %v718, %v785
        %v802 = vadd.f32 %v719, %v786
        %v803 = vadd.f32 %v720, %v787
        %v804 = vadd.f32 %v721, %v788
        %v805 = vadd.f32 %v722, %v789
        %v806 = vadd.f32 %v723, %v790
        %v807 = vadd.f32 %v724, %v791
        %v808 = vadd.f32 %v725, %v792
        %v809 = vadd.f32 %v726, %v793
        %v810 = vadd.f32 %v727, %v794
        %v811 = vadd.f32 %v728, %v795
        %v812 = vadd.f32 %v729, %v796
        %v813 = vadd.f32 %v730, %v797
        %v814 = vsel %vm749, %v765, 0.0
        %v815 = vadd.f32 %v732, %v814
        %v816 = vrot.slane %v541, 5
        %v817 = vrot.slane %v547, 5
        %v818 = vrot.slane %v553, 5
        %v819 = vrot.slane %v559, 5
        %v820 = vrot.slane %v565, 5
        %v821 = vrot.slane %v571, 5
        %v822 = vrot.slane %v577, 5
        %v823 = vrot.slane %v583, 5
        %v824 = vrot.slane %v589, 5
        %v825 = vrot.slane %v595, 5
        %v826 = vrot.slane %v601, 5
        %v827 = vrot.slane %v607, 5
        %v828 = vrot.slane %v613, 5
        %v829 = vrot.slane %v619, 5
        %v830 = vrot.slane %v625, 5
        %v831 = vrot.slane %v631, 5
        %vm832 = vcmp.lt.s32.totalorder %v634, 3
        %v833 = vsel %vm832, %v830, %v831
        %v834 = vsel %vm832, %v829, %v830
        %v835 = vsel %vm832, %v828, %v829
        %v836 = vsel %vm832, %v827, %v828
        %v837 = vsel %vm832, %v826, %v827
        %v838 = vsel %vm832, %v825, %v826
        %v839 = vsel %vm832, %v824, %v825
        %v840 = vsel %vm832, %v823, %v824
        %v841 = vsel %vm832, %v822, %v823
        %v842 = vsel %vm832, %v821, %v822
        %v843 = vsel %vm832, %v820, %v821
        %v844 = vsel %vm832, %v819, %v820
        %v845 = vsel %vm832, %v818, %v819
        %v846 = vsel %vm832, %v817, %v818
        %v847 = vsel %vm832, %v816, %v817
        %v848 = vsel %vm832, %v831, %v816
        %vm849 = vcmp.ge.s32.totalorder %v634, 3
        %vm850 = vcmp.ge.s32.totalorder %v635, 3
        %vm851 = vcmp.ge.s32.totalorder %v636, 3
        %vm852 = vcmp.ge.s32.totalorder %v637, 3
        %vm853 = vcmp.ge.s32.totalorder %v638, 3
        %vm854 = vcmp.ge.s32.totalorder %v639, 3
        %vm855 = vcmp.ge.s32.totalorder %v640, 3
        %vm856 = vcmp.ge.s32.totalorder %v641, 3
        %vm857 = vcmp.ge.s32.totalorder %v642, 3
        %vm858 = vcmp.ge.s32.totalorder %v643, 3
        %vm859 = vcmp.ge.s32.totalorder %v644, 3
        %vm860 = vcmp.ge.s32.totalorder %v645, 3
        %vm861 = vcmp.ge.s32.totalorder %v646, 3
        %vm862 = vcmp.ge.s32.totalorder %v647, 3
        %vm863 = vcmp.ge.s32.totalorder %v648, 3
        %vm864 = vcmp.ge.s32.totalorder %v649, 3
        %v865 = vsel %vm849, %v848, 0.0
        %v866 = vsel %vm850, %v847, 0.0
        %v867 = vsel %vm851, %v846, 0.0
        %v868 = vsel %vm852, %v845, 0.0
        %v869 = vsel %vm853, %v844, 0.0
        %v870 = vsel %vm854, %v843, 0.0
        %v871 = vsel %vm855, %v842, 0.0
        %v872 = vsel %vm856, %v841, 0.0
        %v873 = vsel %vm857, %v840, 0.0
        %v874 = vsel %vm858, %v839, 0.0
        %v875 = vsel %vm859, %v838, 0.0
        %v876 = vsel %vm860, %v837, 0.0
        %v877 = vsel %vm861, %v836, 0.0
        %v878 = vsel %vm862, %v835, 0.0
        %v879 = vsel %vm863, %v834, 0.0
        %v880 = vsel %vm864, %v833, 0.0
        %v881 = vadd.f32 %v798, %v865
        %v882 = vadd.f32 %v799, %v866
        %v883 = vadd.f32 %v800, %v867
        %v884 = vadd.f32 %v801, %v868
        %v885 = vadd.f32 %v802, %v869
        %v886 = vadd.f32 %v803, %v870
        %v887 = vadd.f32 %v804, %v871
        %v888 = vadd.f32 %v805, %v872
        %v889 = vadd.f32 %v806, %v873
        %v890 = vadd.f32 %v807, %v874
        %v891 = vadd.f32 %v808, %v875
        %v892 = vadd.f32 %v809, %v876
        %v893 = vadd.f32 %v810, %v877
        %v894 = vadd.f32 %v811, %v878
        %v895 = vadd.f32 %v812, %v879
        %v896 = vadd.f32 %v813, %v880
        %v897 = vsel %vm832, %v848, 0.0
        %v898 = vadd.f32 %v815, %v897
        %899 = vst [vmem:[%s194] sm:$0xff] %v881
        %900 = vst [vmem:[%s194 + $0x8] sm:$0xff] %v882
        %901 = vst [vmem:[%s194 + $0x10] sm:$0xff] %v883
        %902 = vst [vmem:[%s194 + $0x18] sm:$0xff] %v884
        %903 = vst [vmem:[%s194 + $0x20] sm:$0xff] %v885
        %904 = vst [vmem:[%s194 + $0x28] sm:$0xff] %v886
        %905 = vst [vmem:[%s194 + $0x30] sm:$0xff] %v887
        %906 = vst [vmem:[%s194 + $0x38] sm:$0xff] %v888
        %907 = vst [vmem:[%s194 + $0x40] sm:$0xff] %v889
        %908 = vst [vmem:[%s194 + $0x48] sm:$0xff] %v890
        %909 = vst [vmem:[%s194 + $0x50] sm:$0xff] %v891
        %910 = vst [vmem:[%s194 + $0x58] sm:$0xff] %v892
        %911 = vst [vmem:[%s194 + $0x60] sm:$0xff] %v893
        %912 = vst [vmem:[%s194 + $0x68] sm:$0xff] %v894
        %913 = vst [vmem:[%s194 + $0x70] sm:$0xff] %v895
        %914 = vst [vmem:[%s194 + $0x78] sm:$0xff] %v896
        %915 = vst [vmem:[%s201] sm:$0xff] %v898
        %s916 = sand.u32 %s92, 1
        %s917 = scalar_lea.sflag [#allocation3], %s916
        %s918 = sand.u32 %s92, 1
        %s919 = smul.addr %s918, 128
        %s920 = scalar_lea.vmem [#allocation2], %s919
        %s921 = sand.u32 %s120, 1
        %s922 = scalar_lea.sflag [#allocation5], %s921
        %s923 = sand.u32 %s120, 1
        %s924 = smul.addr %s923, 8
        %s925 = scalar_lea.vmem [#allocation4], %s924
        // Predicated region
        $region29: #{tpu_custom_call.1} parent=27 // pred_check
          %p926 = pneg %p102
        $region30: #{tpu_custom_call.1} parent=27 // pred_check_branch
          %928 = sbr.rel (%p926) target = $region32
        $region31: #{tpu_custom_call.1} parent=27 // pred_region
          %s929 = smul.u32 16, %s26
          %s931 = ssub.s32 2048, 2048
          %932 = vsyncadd %s917, %s931
          %s933 = smul.addr %s25, 32
          %s934 = sadd.s32 %s929, %s933
          %s935 = smul.addr %s934, 128
          %s936 = scalar_lea.hbm %s2, %s935
          %s937 = sshll.u32 %s920, 4
          %s938 = int_to_ptr.vmem [resolvable:$true] %s937
          %943 = dma.vmem_to_hbm [thread:$0]  %s938, 2048, %s936, %s917, 128, 128, 8
        $region32: #{tpu_custom_call.1} parent=27 // pred_fallthru
          _
        // Predicated region
        $region33: #{tpu_custom_call.1} parent=27 // pred_check
          %p944 = pneg %p130
        $region34: #{tpu_custom_call.1} parent=27 // pred_check_branch
          %946 = sbr.rel (%p944) target = $region36
        $region35: #{tpu_custom_call.1} parent=27 // pred_region
          %s948 = ssub.s32 128, 128
          %949 = vsyncadd %s922, %s948
          %s950 = smul.addr %s25, 2
          %s951 = sadd.s32 %s26, %s950
          %s952 = smul.addr %s951, 128
          %s953 = scalar_lea.hbm %s3, %s952
          %s955 = sshll.u32 %s925, 4
          %s956 = int_to_ptr.vmem [resolvable:$true] %s955
          %958 = dma.vmem_to_hbm [thread:$0]  %s956, 128, %s953, %s922
        $region36: #{tpu_custom_call.1} parent=27 // pred_fallthru
          _
      $region28: #{tpu_custom_call.1} parent=5 // pred_fallthru
        _
      %p959 = scmp.le.s32.totalorder 2, %s16
      // Predicated region
      $region37: #{tpu_custom_call.1} parent=5 // pred_check
        %p960 = pneg %p959
      $region38: #{tpu_custom_call.1} parent=5 // pred_check_branch
        %962 = sbr.rel (%p960) target = $region40
      $region39: #{tpu_custom_call.1} parent=5 // pred_region
        %s963 = ssub.s32 %s16, 2
        // Predicated region
        $region41: #{tpu_custom_call.1} parent=39 // pred_check
          %p964 = pneg %p108
        $region42: #{tpu_custom_call.1} parent=39 // pred_check_branch
          %966 = sbr.rel (%p964) target = $region44
        $region43: #{tpu_custom_call.1} parent=39 // pred_region
          %s967 = sand.u32 %s93, 1
          %s968 = scalar_lea.sflag [#allocation3], %s967
          %s969 = sand.u32 %s93, 1
          %s970 = smul.addr %s969, 128
          %s971 = scalar_lea.vmem [#allocation2], %s970
          %972 = dma.done %s968, 2048
        $region44: #{tpu_custom_call.1} parent=39 // pred_fallthru
          _
        // Predicated region
        $region45: #{tpu_custom_call.1} parent=39 // pred_check
          %p973 = pneg %p136
        $region46: #{tpu_custom_call.1} parent=39 // pred_check_branch
          %975 = sbr.rel (%p973) target = $region48
        $region47: #{tpu_custom_call.1} parent=39 // pred_region
          %s976 = sand.u32 %s121, 1
          %s977 = scalar_lea.sflag [#allocation5], %s976
          %s978 = sand.u32 %s121, 1
          %s979 = smul.addr %s978, 8
          %s980 = scalar_lea.vmem [#allocation4], %s979
          %981 = dma.done %s977, 128
        $region48: #{tpu_custom_call.1} parent=39 // pred_fallthru
          _
      $region40: #{tpu_custom_call.1} parent=5 // pred_fallthru
        _
    $region6: #{tpu_custom_call.1} parent=1 // loop_footer
      %s20 = sadd.s32 1, %s16
    $region7: #{tpu_custom_call.1} parent=1 // loop_footer_branch
      %15 = sbr.rel target = $region3
    $region8: #{tpu_custom_call.1} parent=1 // loop_exit
      _
    %982 = vsyncpa [#allocation3], 1
    %s983 = scalar_lea.sflag [#allocation3], 1
    %984 = vsyncpa %s983, 1
    %985 = vsyncpa [#allocation5], 1
    %s986 = scalar_lea.sflag [#allocation5], 1
    %987 = vsyncpa %s986, 1

</llo_original>
